<compile_context>
chip_gen: v7x
topology: tpu7x:2x2x1
jax: 0.10.0
libtpu: 0.0.40
codegen_flags: <defaults>
</compile_context>

<pallas_src>
import functools

import jax
import jax.numpy as jnp
from jax.experimental import pallas as pl
from jax.experimental.pallas import tpu as pltpu

_LANES = 128      # lane width (last dim granularity)
_SUBLANES = 8     # f32 sublane granularity (second-to-last dim)
_MAX_TB = 4096    # batch tile cap: ~6 MiB double-buffered, safe for v5e's 16 MiB
_ONE_TILE_B = 512 # below this, run the whole batch as a single grid step


def _round_up(x, m):
    return (x + m - 1) // m * m


def controller_kernel(z_ref, h_ref, wz_ref, wh_ref, b_ref, o_ref):
    # out = z @ Wz + h @ Wh + b   (== cat([z, h], 1) @ W^T + b)
    acc = jnp.dot(z_ref[...], wz_ref[...], preferred_element_type=jnp.float32)
    acc += jnp.dot(h_ref[...], wh_ref[...], preferred_element_type=jnp.float32)
    o_ref[...] = (acc + b_ref[...]).astype(o_ref.dtype)


def pack_controller_params(w, b, latents):
    """Precompute (once, at init) the padded, split kernel-side weights.

    w: [A, L+R] (PyTorch nn.Linear layout), b: [A]
    -> wz_packed: [L, Ap], wh_packed: [R, Ap], b_packed: [1, Ap]
       with Ap = ceil(A/128)*128.  Zero columns in the padded region contribute
       nothing; the wrapper slices the output back to [:, :A].
    """
    A, K = w.shape
    L = latents
    R = K - L
    Ap = _round_up(A, _LANES)
    wt = w.T  # [K, A]
    wz_packed = jnp.zeros((L, Ap), dtype=w.dtype).at[:, :A].set(wt[:L])
    wh_packed = jnp.zeros((R, Ap), dtype=w.dtype).at[:, :A].set(wt[L:])
    b_packed = jnp.zeros((1, Ap), dtype=b.dtype).at[0, :A].set(b)
    return wz_packed, wh_packed, b_packed


def _choose_tb(B):
    """Batch tile: one tile for small B; >=2 big tiles otherwise (v7x megacore),
    capped so VMEM usage stays small on v5e/v6e."""
    if B <= _ONE_TILE_B:
        return B                      # single grid step; block == full batch dim
    half = -(-B // 2)                 # at least 2 tiles so both v7x TCs get work
    return min(_MAX_TB, _round_up(half, _SUBLANES))


@functools.partial(jax.jit, static_argnames=("actions",))
def controller_forward(z, h, wz_packed, wh_packed, b_packed, *, actions):
    """z: [B, L], h: [B, R], packed weights from pack_controller_params -> [B, A]."""
    B, L = z.shape
    R = h.shape[1]
    Ap = wz_packed.shape[1]

    TB = _choose_tb(B)
    grid = (pl.cdiv(B, TB),)

    out = pl.pallas_call(
        controller_kernel,
        out_shape=jax.ShapeDtypeStruct((B, Ap), z.dtype),
        grid=grid,
        in_specs=[
            pl.BlockSpec((TB, L), lambda i: (i, 0)),   # latents: tiled over batch
            pl.BlockSpec((TB, R), lambda i: (i, 0)),   # recurrents: tiled over batch
            pl.BlockSpec((L, Ap), lambda i: (0, 0)),   # Wz: pinned in VMEM
            pl.BlockSpec((R, Ap), lambda i: (0, 0)),   # Wh: pinned in VMEM
            pl.BlockSpec((1, Ap), lambda i: (0, 0)),   # bias: pinned in VMEM
        ],
        out_specs=pl.BlockSpec((TB, Ap), lambda i: (i, 0)),
        compiler_params=pltpu.CompilerParams(
            dimension_semantics=("parallel",),          # shard batch tiles across TCs (v7x)
        ),
    )(z, h, wz_packed, wh_packed, b_packed)

    return out[:, :actions]


if __name__ == "__main__":
    # Small shapes consistent with the module:
    #   latents=32, recurrents=32, actions=16, batch=4
    B, L, R, A = 4, 32, 32, 16

    key = jax.random.PRNGKey(0)
    k_z, k_h, k_w, k_b = jax.random.split(key, 4)

    z = jax.random.normal(k_z, (B, L), dtype=jnp.float32)
    h = jax.random.normal(k_h, (B, R), dtype=jnp.float32)

    # Deterministic "nn.Linear"-style init: U(-1/sqrt(fan_in), 1/sqrt(fan_in))
    fan_in = L + R
    bound = 1.0 / (fan_in ** 0.5)
    w = jax.random.uniform(k_w, (A, fan_in), minval=-bound, maxval=bound,
                           dtype=jnp.float32)   # PyTorch layout [A, L+R]
    b = jax.random.uniform(k_b, (A,), minval=-bound, maxval=bound,
                           dtype=jnp.float32)

    # Pack/pad/split weights ONCE (outside the per-step hot path).
    wz_packed, wh_packed, b_packed = pack_controller_params(w, b, latents=L)

    # Small-batch control-step path (single grid step, no pad, no concat).
    out = controller_forward(z, h, wz_packed, wh_packed, b_packed, actions=A)
    jax.block_until_ready(out)

    ref = jnp.concatenate([z, h], axis=1) @ w.T + b
    assert out.shape == (B, A)
    assert jnp.allclose(out, ref, atol=1e-5, rtol=1e-5)

    # Larger batch exercising multiple tiles + a partial (OOB-masked) last block.
    B2 = 1000
    z2 = jax.random.normal(k_z, (B2, L), dtype=jnp.float32)
    h2 = jax.random.normal(k_h, (B2, R), dtype=jnp.float32)
    out2 = controller_forward(z2, h2, wz_packed, wh_packed, b_packed, actions=A)
    jax.block_until_ready(out2)

    ref2 = jnp.concatenate([z2, h2], axis=1) @ w.T + b
    assert out2.shape == (B2, A)
    assert jnp.allclose(out2, ref2, atol=1e-5, rtol=1e-5)

    print("KERNEL_OK")
</pallas_src>

<mosaic_0001>
module attributes {stable_mosaic.version = 11 : i64} {
  func.func @controller_kernel(%arg0: i32, %arg1: memref<4x32xf32, #tpu.memory_space<vmem>>, %arg2: memref<4x32xf32, #tpu.memory_space<vmem>>, %arg3: memref<32x128xf32, #tpu.memory_space<vmem>>, %arg4: memref<32x128xf32, #tpu.memory_space<vmem>>, %arg5: memref<1x128xf32, #tpu.memory_space<vmem>>, %arg6: memref<4x128xf32, #tpu.memory_space<vmem>>) attributes {dimension_semantics = [#tpu.dimension_semantics<parallel>], iteration_bounds = array<i64: 1>, scalar_prefetch = 0 : i64, scratch_operands = 0 : i64, tpu.core_type = #tpu.core_type<tc>, window_params = [{transform_indices = @transform_0, window_bounds = array<i64: 4, 32>}, {transform_indices = @transform_1, window_bounds = array<i64: 4, 32>}, {pipeline_mode = #tpu.pipeline_mode<synchronous>, transform_indices = @transform_2, window_bounds = array<i64: 32, 128>}, {pipeline_mode = #tpu.pipeline_mode<synchronous>, transform_indices = @transform_3, window_bounds = array<i64: 32, 128>}, {pipeline_mode = #tpu.pipeline_mode<synchronous>, transform_indices = @transform_4, window_bounds = array<i64: 1, 128>}, {transform_indices = @transform_5, window_bounds = array<i64: 4, 128>}]} {
    %c0 = arith.constant 0 : index
    %c0_0 = arith.constant 0 : index
    %0 = vector.load %arg1[%c0, %c0_0] : memref<4x32xf32, #tpu.memory_space<vmem>>, vector<4x32xf32>
    %c0_1 = arith.constant 0 : index
    %c0_2 = arith.constant 0 : index
    %1 = vector.load %arg3[%c0_1, %c0_2] : memref<32x128xf32, #tpu.memory_space<vmem>>, vector<32x128xf32>
    %cst = arith.constant dense<0.000000e+00> : vector<4x128xf32>
    %2 = tpu.matmul %0, %1, %cst {dimension_numbers = #tpu.dot_dimension_numbers<[1], [0], [0], [1], [0, 0, 1, 1], [], []>} : vector<4x32xf32>, vector<32x128xf32>, vector<4x128xf32> -> vector<4x128xf32>
    %c0_3 = arith.constant 0 : index
    %c0_4 = arith.constant 0 : index
    %3 = vector.load %arg2[%c0_3, %c0_4] : memref<4x32xf32, #tpu.memory_space<vmem>>, vector<4x32xf32>
    %c0_5 = arith.constant 0 : index
    %c0_6 = arith.constant 0 : index
    %4 = vector.load %arg4[%c0_5, %c0_6] : memref<32x128xf32, #tpu.memory_space<vmem>>, vector<32x128xf32>
    %cst_7 = arith.constant dense<0.000000e+00> : vector<4x128xf32>
    %5 = tpu.matmul %3, %4, %cst_7 {dimension_numbers = #tpu.dot_dimension_numbers<[1], [0], [0], [1], [0, 0, 1, 1], [], []>} : vector<4x32xf32>, vector<32x128xf32>, vector<4x128xf32> -> vector<4x128xf32>
    %6 = arith.addf %2, %5 : vector<4x128xf32>
    %c0_8 = arith.constant 0 : index
    %c0_9 = arith.constant 0 : index
    %7 = vector.load %arg5[%c0_8, %c0_9] : memref<1x128xf32, #tpu.memory_space<vmem>>, vector<1x128xf32>
    %8 = vector.broadcast %7 : vector<1x128xf32> to vector<4x128xf32>
    %9 = arith.addf %6, %8 : vector<4x128xf32>
    %c0_10 = arith.constant 0 : index
    %c0_11 = arith.constant 0 : index
    %10 = vector.load %arg6[%c0_10, %c0_11] : memref<4x128xf32, #tpu.memory_space<vmem>>, vector<4x128xf32>
    tpu.vector_store %arg6[%c0_10, %c0_11], %9 {strides = array<i32>} : memref<4x128xf32, #tpu.memory_space<vmem>>, vector<4x128xf32>,
    return
  }
  func.func @transform_0(%arg0: i32) -> (i32, i32) {
    %c0_i32 = arith.constant 0 : i32
    %c0_i32_0 = arith.constant 0 : i32
    return %arg0, %c0_i32 : i32, i32
  }
  func.func @transform_1(%arg0: i32) -> (i32, i32) {
    %c0_i32 = arith.constant 0 : i32
    %c0_i32_0 = arith.constant 0 : i32
    return %arg0, %c0_i32 : i32, i32
  }
  func.func @transform_2(%arg0: i32) -> (i32, i32) {
    %c0_i32 = arith.constant 0 : i32
    %c0_i32_0 = arith.constant 0 : i32
    %c0_i32_1 = arith.constant 0 : i32
    return %c0_i32, %c0_i32_0 : i32, i32
  }
  func.func @transform_3(%arg0: i32) -> (i32, i32) {
    %c0_i32 = arith.constant 0 : i32
    %c0_i32_0 = arith.constant 0 : i32
    %c0_i32_1 = arith.constant 0 : i32
    return %c0_i32, %c0_i32_0 : i32, i32
  }
  func.func @transform_4(%arg0: i32) -> (i32, i32) {
    %c0_i32 = arith.constant 0 : i32
    %c0_i32_0 = arith.constant 0 : i32
    %c0_i32_1 = arith.constant 0 : i32
    return %c0_i32, %c0_i32_0 : i32, i32
  }
  func.func @transform_5(%arg0: i32) -> (i32, i32) {
    %c0_i32 = arith.constant 0 : i32
    %c0_i32_0 = arith.constant 0 : i32
    return %arg0, %c0_i32 : i32, i32
  }
}

</mosaic_0001>

<llo_original>
// kernel: controller_forward.1
$region0: #{controller_forward.1}
  #allocation0 [shape = 'u32[]', space=smem, size = 0x4, offset = 0x4, fixed_abs, tag = 'smem constant byte address 0x4 - core index']
  #allocation1 [shape = 'u32[144,128]{1,0:T(1,128)}', space=vmem, size = 0x12000, scoped, tag = 'internal scratch']
  %s0 = inlined_call_operand.hbm [shape: f32[4,32], index: 0, kind: input, shape index: {}]
  %s1 = inlined_call_operand.hbm [shape: f32[4,32], index: 1, kind: input, shape index: {}]
  %s2 = inlined_call_operand.hbm [shape: f32[32,128], index: 2, kind: input, shape index: {}]
  %s3 = inlined_call_operand.hbm [shape: f32[32,128], index: 3, kind: input, shape index: {}]
  %s4 = inlined_call_operand.vmem [shape: f32[1,128], index: 4, kind: input, shape index: {}]
  %s5 = inlined_call_operand.hbm [shape: f32[4,128], index: 5, kind: output, shape index: {}]
  %s6 = sld [smem:[#allocation0]]
  $region46: #{controller_forward.1} parent=0
    _
  %s8 = ssub.s32 1, %s6
  %s9 = scalar_select 0, %s8, %s6
  $region1: #{controller_forward.1} parent=0
    #allocation2 [shape = 'u8[2048]{0}', space=vmem, size = 0x800, scoped, tag = 'input window, operand 0, single buffered']
    #allocation3 [shape = 's32[1]{0}', space=sflag, size = 0x4, scoped, tag = 'scoped memory for controller_forward.1']
    #allocation4 [shape = 's32[1]{0}', space=sflag, size = 0x4, scoped, tag = 'scoped memory for controller_forward.1']
    #allocation5 [shape = 'u8[2048]{0}', space=vmem, size = 0x800, scoped, tag = 'input window, operand 1, single buffered']
    #allocation6 [shape = 's32[1]{0}', space=sflag, size = 0x4, scoped, tag = 'scoped memory for controller_forward.1']
    #allocation7 [shape = 'u8[16384]{0}', space=vmem, size = 0x4000, scoped, tag = 'input window, operand 2, single buffered']
    #allocation8 [shape = 'u8[16384]{0}', space=vmem, size = 0x4000, scoped, tag = 'input window, operand 3, single buffered']
    #allocation9 [shape = 's32[1]{0}', space=sflag, size = 0x4, scoped, tag = 'scoped memory for controller_forward.1']
    #allocation10 [shape = 'u8[2048]{0}', space=vmem, size = 0x800, scoped, tag = 'output window, operand 0, single buffered']
    %10 = vsyncpa [#allocation3], 0
    %11 = vsyncpa [#allocation6], 0
    %12 = vsyncpa [#allocation9], 0
    %13 = vsyncpa [#allocation4], 0
    // Predicated region
    $region2: #{controller_forward.1} parent=1 // pred_check
      _
    $region3: #{controller_forward.1} parent=1 // pred_check_branch
      %15 = sbr.rel (0) target = $region5
    $region4: #{controller_forward.1} parent=1 // pred_region
      %s17 = ssub.s32 64, 64
      %18 = vsyncadd [#allocation3], %s17
      %s20 = sshll.u32 [#allocation2], 4
      %s21 = int_to_ptr.vmem [resolvable:$true] %s20
      %23 = dma.hbm_to_vmem [thread:$0]  %s0, 64, %s21, [#allocation3]
    $region5: #{controller_forward.1} parent=1 // pred_fallthru
      _
    // Predicated region
    $region6: #{controller_forward.1} parent=1 // pred_check
      _
    $region7: #{controller_forward.1} parent=1 // pred_check_branch
      %25 = sbr.rel (0) target = $region9
    $region8: #{controller_forward.1} parent=1 // pred_region
      %s27 = ssub.s32 64, 64
      %28 = vsyncadd [#allocation6], %s27
      %s30 = sshll.u32 [#allocation5], 4
      %s31 = int_to_ptr.vmem [resolvable:$true] %s30
      %33 = dma.hbm_to_vmem [thread:$0]  %s1, 64, %s31, [#allocation6]
    $region9: #{controller_forward.1} parent=1 // pred_fallthru
      _
    // Predicated region
    $region10: #{controller_forward.1} parent=1 // pred_check
      _
    $region11: #{controller_forward.1} parent=1 // pred_check_branch
      %35 = sbr.rel (0) target = $region13
    $region12: #{controller_forward.1} parent=1 // pred_region
      %s37 = ssub.s32 512, 512
      %38 = vsyncadd [#allocation6], %s37
      %s39 = sshll.u32 [#allocation7], 4
      %s40 = int_to_ptr.vmem [resolvable:$true] %s39
      %45 = dma.hbm_to_vmem [thread:$0]  %s2, 512, %s40, [#allocation6], 128, 128, 8
    $region13: #{controller_forward.1} parent=1 // pred_fallthru
      _
    // Predicated region
    $region14: #{controller_forward.1} parent=1 // pred_check
      _
    $region15: #{controller_forward.1} parent=1 // pred_check_branch
      %47 = sbr.rel (0) target = $region17
    $region16: #{controller_forward.1} parent=1 // pred_region
      %s49 = ssub.s32 512, 512
      %50 = vsyncadd [#allocation9], %s49
      %s51 = sshll.u32 [#allocation8], 4
      %s52 = int_to_ptr.vmem [resolvable:$true] %s51
      %57 = dma.hbm_to_vmem [thread:$0]  %s3, 512, %s52, [#allocation9], 128, 128, 8
    $region17: #{controller_forward.1} parent=1 // pred_fallthru
      _
    // Predicated region
    $region18: #{controller_forward.1} parent=1 // pred_check
      _
    $region19: #{controller_forward.1} parent=1 // pred_check_branch
      %59 = sbr.rel (0) target = $region21
    $region20: #{controller_forward.1} parent=1 // pred_region
      _
    $region21: #{controller_forward.1} parent=1 // pred_fallthru
      _
    // Predicated region
    $region22: #{controller_forward.1} parent=1 // pred_check
      _
    $region23: #{controller_forward.1} parent=1 // pred_check_branch
      %61 = sbr.rel (0) target = $region25
    $region24: #{controller_forward.1} parent=1 // pred_region
      %62 = dma.done [#allocation3], 64
    $region25: #{controller_forward.1} parent=1 // pred_fallthru
      _
    // Predicated region
    $region26: #{controller_forward.1} parent=1 // pred_check
      _
    $region27: #{controller_forward.1} parent=1 // pred_check_branch
      %64 = sbr.rel (0) target = $region29
    $region28: #{controller_forward.1} parent=1 // pred_region
      %65 = dma.done [#allocation6], 64
    $region29: #{controller_forward.1} parent=1 // pred_fallthru
      _
    // Predicated region
    $region30: #{controller_forward.1} parent=1 // pred_check
      _
    $region31: #{controller_forward.1} parent=1 // pred_check_branch
      %67 = sbr.rel (0) target = $region33
    $region32: #{controller_forward.1} parent=1 // pred_region
      %68 = dma.done [#allocation6], 512
    $region33: #{controller_forward.1} parent=1 // pred_fallthru
      _
    // Predicated region
    $region34: #{controller_forward.1} parent=1 // pred_check
      _
    $region35: #{controller_forward.1} parent=1 // pred_check_branch
      %70 = sbr.rel (0) target = $region37
    $region36: #{controller_forward.1} parent=1 // pred_region
      %71 = dma.done [#allocation9], 512
    $region37: #{controller_forward.1} parent=1 // pred_fallthru
      _
    %v72 = vld [vmem:[#allocation2] sm:$0xf]
    %v73 = vld [vmem:[#allocation7] sm:$0xff]
    %v74 = vld [vmem:[#allocation7 + $0x8] sm:$0xff]
    %v75 = vld [vmem:[#allocation7 + $0x10] sm:$0xff]
    %v76 = vld [vmem:[#allocation7 + $0x18] sm:$0xff]
    %v77 = vld [vmem:[#allocation5] sm:$0xf]
    %v78 = vld [vmem:[#allocation8] sm:$0xff]
    %v79 = vld [vmem:[#allocation8 + $0x8] sm:$0xff]
    %v80 = vld [vmem:[#allocation8 + $0x10] sm:$0xff]
    %v81 = vld [vmem:[#allocation8 + $0x18] sm:$0xff]
    %vm82 = vcmask 261120
    %v84 = vsel %vm82, %v77, 0
    %86 = vmatprep.subr.mxu0 0.0
    %87 = vmatpush1.msra.mxu0 %v78
    %88 = vmatprep.subr.mxu0 0.0
    %89 = vmatpush1.msra.mxu0 %v79
    %90 = vmatprep.subr.mxu0 0.0
    %91 = vmatpush1.msra.mxu0 %v80
    %92 = vmatprep.subr.mxu0 0.0
    %93 = vmatpush1.msra.mxu0 %v81
    %94 = vmatprep.subr.mxu0 0.0
    %95 = vmatpush1.msra.mxu0 0.0
    %96 = vmatprep.subr.mxu0 0.0
    %97 = vmatpush1.msra.mxu0 0.0
    %98 = vmatprep.subr.mxu0 0.0
    %99 = vmatpush1.msra.mxu0 0.0
    %100 = vmatprep.subr.mxu0 0.0
    %101 = vmatpush1.msra.mxu0 0.0
    %102 = vmatprep.subr.mxu0 0.0
    %103 = vmatpush1.msra.mxu0 0.0
    %104 = vmatprep.subr.mxu0 0.0
    %105 = vmatpush1.msra.mxu0 0.0
    %106 = vmatprep.subr.mxu0 0.0
    %107 = vmatpush1.msra.mxu0 0.0
    %108 = vmatprep.subr.mxu0 0.0
    %109 = vmatpush1.msra.mxu0 0.0
    %110 = vmatprep.subr.mxu0 0.0
    %111 = vmatpush1.msra.mxu0 0.0
    %112 = vmatprep.subr.mxu0 0.0
    %113 = vmatpush1.msra.mxu0 0.0
    %114 = vmatprep.subr.mxu0 0.0
    %115 = vmatpush1.msra.mxu0 0.0
    %116 = vmatprep.subr.mxu0 0.0
    %117 = vmatpush1.msra.mxu0 0.0
    %118 = vmatprep.subr.mxu0 0.0
    %119 = vmatpush1.msra.mxu0 0.0
    %120 = vmatprep.subr.mxu0 0.0
    %121 = vmatpush1.msra.mxu0 0.0
    %122 = vmatprep.subr.mxu0 0.0
    %123 = vmatpush1.msra.mxu0 0.0
    %124 = vmatprep.subr.mxu0 0.0
    %125 = vmatpush1.msra.mxu0 0.0
    %126 = vmatprep.subr.mxu0 0.0
    %127 = vmatpush1.msra.mxu0 0.0
    %128 = vmatprep.subr.mxu0 0.0
    %129 = vmatpush1.msra.mxu0 0.0
    %130 = vmatprep.subr.mxu0 0.0
    %131 = vmatpush1.msra.mxu0 0.0
    %132 = vmatprep.subr.mxu0 0.0
    %133 = vmatpush1.msra.mxu0 0.0
    %134 = vmatprep.subr.mxu0 0.0
    %135 = vmatpush1.msra.mxu0 0.0
    %136 = vmatprep.subr.mxu0 0.0
    %137 = vmatpush1.msra.mxu0 0.0
    %138 = vmatprep.subr.mxu0 0.0
    %139 = vmatpush1.msra.mxu0 0.0
    %140 = vmatprep.subr.mxu0 0.0
    %141 = vmatpush1.msra.mxu0 0.0
    %142 = vmatprep.subr.mxu0 0.0
    %143 = vmatpush1.msra.mxu0 0.0
    %144 = vmatprep.subr.mxu0 0.0
    %145 = vmatpush1.msra.mxu0 0.0
    %146 = vmatprep.subr.mxu0 0.0
    %147 = vmatpush1.msra.mxu0 0.0
    %148 = vmatprep.subr.mxu0 0.0
    %149 = vmatpush1.msra.mxu0 0.0
    %150 = vmatprep.mubr.f32.mxu0 0.0
    %151 = vmatmul.mubr.f32.gmra.mrb[0].mxu0 %v84
    %v152 = vpop.f32.mrb[0].mxu0
    %v153 = vadd.f32 0.0, %v152
    %v154 = vpop.f32.mrb[0].mxu0
    %155 = vdwg.mxu0
    %v157 = vsel %vm82, %v72, 0
    %159 = vmatprep.subr.mxu0 0.0
    %160 = vmatpush1.msra.mxu0 %v73
    %161 = vmatprep.subr.mxu0 0.0
    %162 = vmatpush1.msra.mxu0 %v74
    %163 = vmatprep.subr.mxu0 0.0
    %164 = vmatpush1.msra.mxu0 %v75
    %165 = vmatprep.subr.mxu0 0.0
    %166 = vmatpush1.msra.mxu0 %v76
    %167 = vmatprep.subr.mxu0 0.0
    %168 = vmatpush1.msra.mxu0 0.0
    %169 = vmatprep.subr.mxu0 0.0
    %170 = vmatpush1.msra.mxu0 0.0
    %171 = vmatprep.subr.mxu0 0.0
    %172 = vmatpush1.msra.mxu0 0.0
    %173 = vmatprep.subr.mxu0 0.0
    %174 = vmatpush1.msra.mxu0 0.0
    %175 = vmatprep.subr.mxu0 0.0
    %176 = vmatpush1.msra.mxu0 0.0
    %177 = vmatprep.subr.mxu0 0.0
    %178 = vmatpush1.msra.mxu0 0.0
    %179 = vmatprep.subr.mxu0 0.0
    %180 = vmatpush1.msra.mxu0 0.0
    %181 = vmatprep.subr.mxu0 0.0
    %182 = vmatpush1.msra.mxu0 0.0
    %183 = vmatprep.subr.mxu0 0.0
    %184 = vmatpush1.msra.mxu0 0.0
    %185 = vmatprep.subr.mxu0 0.0
    %186 = vmatpush1.msra.mxu0 0.0
    %187 = vmatprep.subr.mxu0 0.0
    %188 = vmatpush1.msra.mxu0 0.0
    %189 = vmatprep.subr.mxu0 0.0
    %190 = vmatpush1.msra.mxu0 0.0
    %191 = vmatprep.subr.mxu0 0.0
    %192 = vmatpush1.msra.mxu0 0.0
    %193 = vmatprep.subr.mxu0 0.0
    %194 = vmatpush1.msra.mxu0 0.0
    %195 = vmatprep.subr.mxu0 0.0
    %196 = vmatpush1.msra.mxu0 0.0
    %197 = vmatprep.subr.mxu0 0.0
    %198 = vmatpush1.msra.mxu0 0.0
    %199 = vmatprep.subr.mxu0 0.0
    %200 = vmatpush1.msra.mxu0 0.0
    %201 = vmatprep.subr.mxu0 0.0
    %202 = vmatpush1.msra.mxu0 0.0
    %203 = vmatprep.subr.mxu0 0.0
    %204 = vmatpush1.msra.mxu0 0.0
    %205 = vmatprep.subr.mxu0 0.0
    %206 = vmatpush1.msra.mxu0 0.0
    %207 = vmatprep.subr.mxu0 0.0
    %208 = vmatpush1.msra.mxu0 0.0
    %209 = vmatprep.subr.mxu0 0.0
    %210 = vmatpush1.msra.mxu0 0.0
    %211 = vmatprep.subr.mxu0 0.0
    %212 = vmatpush1.msra.mxu0 0.0
    %213 = vmatprep.subr.mxu0 0.0
    %214 = vmatpush1.msra.mxu0 0.0
    %215 = vmatprep.subr.mxu0 0.0
    %216 = vmatpush1.msra.mxu0 0.0
    %217 = vmatprep.subr.mxu0 0.0
    %218 = vmatpush1.msra.mxu0 0.0
    %219 = vmatprep.subr.mxu0 0.0
    %220 = vmatpush1.msra.mxu0 0.0
    %221 = vmatprep.subr.mxu0 0.0
    %222 = vmatpush1.msra.mxu0 0.0
    %223 = vmatprep.mubr.f32.mxu0 0.0
    %224 = vmatmul.mubr.f32.gmra.mrb[0].mxu0 %v157
    %v225 = vpop.f32.mrb[0].mxu0
    %v226 = vadd.f32 %v153, %v225
    %v227 = vpop.f32.mrb[0].mxu0
    %228 = vdwg.mxu0
    %v229 = vld [vmem:[%s4] sm:$0x1]
    %v231 = vlaneseq
    %v232 = vshrl.u32 %v231, 7
    %v233 = vsub.s32 0, %v232
    %v234 = vrot.slane %v229, %v233
    %v236 = vadd.f32 %v226, %v234
    %237 = vst [vmem:[#allocation10] sm:$0xf] %v236
    // Predicated region
    $region38: #{controller_forward.1} parent=1 // pred_check
      _
    $region39: #{controller_forward.1} parent=1 // pred_check_branch
      %239 = sbr.rel (0) target = $region41
    $region40: #{controller_forward.1} parent=1 // pred_region
      %s241 = ssub.s32 64, 64
      %242 = vsyncadd [#allocation4], %s241
      %s244 = sshll.u32 [#allocation10], 4
      %s245 = int_to_ptr.vmem [resolvable:$true] %s244
      %247 = dma.vmem_to_hbm [thread:$0]  %s245, 64, %s5, [#allocation4]
    $region41: #{controller_forward.1} parent=1 // pred_fallthru
      _
    // Predicated region
    $region42: #{controller_forward.1} parent=1 // pred_check
      _
    $region43: #{controller_forward.1} parent=1 // pred_check_branch
      %249 = sbr.rel (0) target = $region45
    $region44: #{controller_forward.1} parent=1 // pred_region
      %250 = dma.done [#allocation4], 64
    $region45: #{controller_forward.1} parent=1 // pred_fallthru
      _
    %251 = vsyncpa [#allocation3], 1
    %252 = vsyncpa [#allocation6], 1
    %253 = vsyncpa [#allocation9], 1
    %254 = vsyncpa [#allocation4], 1

</llo_original>
